<compile_context>
chip_gen: v7x
topology: tpu7x:2x2x1
jax: 0.10.0
libtpu: 0.0.40
codegen_flags: <defaults>
</compile_context>

<pallas_src>
import sys
from functools import partial

import jax
import jax.numpy as jnp
from jax.experimental import pallas as pl
from jax.experimental.pallas import tpu as pltpu

VMEM_LIMIT = 32 * 1024 * 1024  # safe on v5e (16 MiB default scoped) .. v7x (64 MiB phys)


# ----------------------------------------------------------------------------
# Pallas kernels
# ----------------------------------------------------------------------------
def _linear_kernel(x_ref, w_ref, b_ref, o_ref, acc_ref):
    # x_ref: (tm, tk), w_ref: (tn, tk)  (W stored [H_out, H_in] -> contract dim 1 of both)
    k = pl.program_id(2)

    @pl.when(k == 0)
    def _():
        acc_ref[...] = jnp.zeros_like(acc_ref)

    acc_ref[...] += jax.lax.dot_general(
        x_ref[...], w_ref[...],
        dimension_numbers=(((1,), (1,)), ((), ())),
        preferred_element_type=jnp.float32,
    )

    # bias add + writeback only in the epilogue (keeps the K loop MXU-only)
    @pl.when(k == pl.num_programs(2) - 1)
    def _():
        o_ref[...] = (acc_ref[...] + b_ref[...].astype(jnp.float32)).astype(o_ref.dtype)


def _ema_kernel(s_ref, p_ref, o_ref, *, decay):
    # shadow.sub_((1 - decay) * (shadow - param)), computed in f32, stored in leaf dtype
    s = s_ref[...].astype(jnp.float32)
    p = p_ref[...].astype(jnp.float32)
    o_ref[...] = (s - (1.0 - decay) * (s - p)).astype(o_ref.dtype)


# ----------------------------------------------------------------------------
# Linear forward wrapper (tiled matmul)
# ----------------------------------------------------------------------------
def _tile(dim, target):
    """Return (tile, padded_dim) so tile divides padded_dim."""
    if dim <= target:
        return dim, dim
    padded = ((dim + target - 1) // target) * target
    return target, padded


def linear_forward(params, x):
    """params = {'weight': [H_out, H_in], 'bias': [H_out]}; x: [B, S, H_in]."""
    w, b = params["weight"], params["bias"]
    B, S, H_in = x.shape
    H_out = w.shape[0]
    M, K, N = B * S, H_in, H_out

    tm, Mp = _tile(M, 256)
    tk, Kp = _tile(K, 256)
    tn, Np = _tile(N, 256)

    x2 = x.reshape(M, K)
    if (Mp, Kp) != (M, K):
        x2 = jnp.pad(x2, ((0, Mp - M), (0, Kp - K)))
    w2 = w
    if (Np, Kp) != (N, K):
        w2 = jnp.pad(w, ((0, Np - N), (0, Kp - K)))
    b2 = b.reshape(1, N)
    if Np != N:
        b2 = jnp.pad(b2, ((0, 0), (0, Np - N)))

    grid = (Mp // tm, Np // tn, Kp // tk)

    out = pl.pallas_call(
        _linear_kernel,
        out_shape=jax.ShapeDtypeStruct((Mp, Np), x.dtype),
        grid_spec=pltpu.PrefetchScalarGridSpec(
            num_scalar_prefetch=0,
            grid=grid,
            in_specs=[
                pl.BlockSpec((tm, tk), lambda i, j, k: (i, k)),   # x tile
                pl.BlockSpec((tn, tk), lambda i, j, k: (j, k)),   # W tile (no transpose)
                pl.BlockSpec((1, tn), lambda i, j, k: (0, j)),    # bias tile
            ],
            out_specs=pl.BlockSpec((tm, tn), lambda i, j, k: (i, j)),
            scratch_shapes=[pltpu.VMEM((tm, tn), jnp.float32)],
        ),
        compiler_params=pltpu.CompilerParams(
            dimension_semantics=("parallel", "parallel", "arbitrary"),
            vmem_limit_bytes=VMEM_LIMIT,
        ),
    )(x2, w2, b2)

    if (Mp, Np) != (M, N):
        out = out[:M, :N]
    return out.reshape(B, S, N)


# ----------------------------------------------------------------------------
# EMA update (per-leaf, tiled, aliased in-place)
# ----------------------------------------------------------------------------
def _ema_update_leaf(shadow, param, decay):
    shape, dtype = shadow.shape, shadow.dtype
    param = param.astype(dtype)

    # Lane-dense 2D view of the leaf (no cross-leaf concat/pad/slice round-trips).
    if shadow.ndim >= 2:
        s2 = shadow.reshape(-1, shape[-1])
    elif shadow.size % 512 == 0:
        s2 = shadow.reshape(-1, 512)
    elif shadow.size % 128 == 0:
        s2 = shadow.reshape(-1, 128)
    else:
        s2 = shadow.reshape(1, -1)
    p2 = param.reshape(s2.shape)
    R, C = s2.shape

    itemsize = jnp.dtype(dtype).itemsize
    # Column tile: full width unless huge and 128-aligned.
    tc = 512 if (C > 512 and C % 128 == 0) else C
    # Row tile: ~1 MiB per block, multiple of 8 (or the full R for small leaves).
    target_rows = max(1, (1 << 20) // max(tc * itemsize, 1))
    if R <= max(8, target_rows):
        tr = R
    else:
        tr = max(8, (min(target_rows, R) // 8) * 8)

    grid = (pl.cdiv(R, tr), pl.cdiv(C, tc))

    out = pl.pallas_call(
        partial(_ema_kernel, decay=float(decay)),
        out_shape=jax.ShapeDtypeStruct((R, C), dtype),
        grid=grid,
        in_specs=[
            pl.BlockSpec((tr, tc), lambda i, j: (i, j)),
            pl.BlockSpec((tr, tc), lambda i, j: (i, j)),
        ],
        out_specs=pl.BlockSpec((tr, tc), lambda i, j: (i, j)),
        input_output_aliases={0: 0},  # in-place style update of the shadow buffer
        compiler_params=pltpu.CompilerParams(
            dimension_semantics=("parallel", "parallel"),
            vmem_limit_bytes=VMEM_LIMIT,
        ),
    )(s2, p2)
    return out.reshape(shape)


@partial(jax.jit, static_argnums=2, donate_argnums=0)
def ema_update_params(shadow_params, model_params, decay):
    """Elementwise EMA update, one small tiled Pallas kernel per leaf."""
    return jax.tree_util.tree_map(
        lambda s, p: _ema_update_leaf(s, p, decay), shadow_params, model_params
    )


# ----------------------------------------------------------------------------
# EMA module (mirrors the PyTorch wrapper semantics)
# ----------------------------------------------------------------------------
class EMA:
    def __init__(self, model_params, decay, forward_fn):
        self.decay = decay
        self.forward_fn = forward_fn
        self.model_params = model_params
        # shadow = deepcopy(model); detached copies of the parameters
        self.shadow_params = jax.tree_util.tree_map(lambda p: p.copy(), model_params)
        self.training = True

    def train(self):
        self.training = True

    def eval(self):
        self.training = False

    def update(self):
        if not self.training:
            print('EMA update should only be called during training',
                  file=sys.stderr, flush=True)
            return
        self.shadow_params = ema_update_params(
            self.shadow_params, self.model_params, self.decay
        )
        # TODO(synk): buffer copy path omitted — synthetic inner Linear model has no buffers.

    def __call__(self, *inputs):
        params = self.model_params if self.training else self.shadow_params
        return self.forward_fn(params, *inputs)

    def state_dict(self):
        if self.training:
            return self.model_params
        print('Saving state_dict for shadow weights...')
        return self.shadow_params


# ----------------------------------------------------------------------------
# Demo / sanity check
# ----------------------------------------------------------------------------
if __name__ == "__main__":
    key = jax.random.PRNGKey(0)
    k_w, k_b, k_x, k_dw, k_db = jax.random.split(key, 5)

    B, S, H_in, H_out = 2, 8, 32, 32
    decay = 0.9

    model_params = {
        "weight": jax.random.normal(k_w, (H_out, H_in), jnp.float32) * 0.1,
        "bias": jax.random.normal(k_b, (H_out,), jnp.float32) * 0.1,
    }
    x = jax.random.normal(k_x, (B, S, H_in), jnp.float32)

    ema = EMA(model_params, decay, linear_forward)

    # --- training-mode forward uses live model params -----------------------
    y_train = ema(x)
    y_train_ref = x.reshape(-1, H_in) @ model_params["weight"].T + model_params["bias"]
    assert jnp.allclose(y_train, y_train_ref.reshape(B, S, H_out), atol=1e-5)

    # --- simulate an optimizer step on the live model, then EMA update ------
    ema.model_params = {
        "weight": model_params["weight"]
        + 0.05 * jax.random.normal(k_dw, (H_out, H_in), jnp.float32),
        "bias": model_params["bias"]
        + 0.05 * jax.random.normal(k_db, (H_out,), jnp.float32),
    }
    ema.update()
    ema.update()

    # pure-JAX reference of the two EMA steps
    ref_shadow = {k: v for k, v in model_params.items()}
    for _ in range(2):
        ref_shadow = {
            k: ref_shadow[k] - (1.0 - decay) * (ref_shadow[k] - ema.model_params[k])
            for k in ref_shadow
        }
    for k in ref_shadow:
        assert jnp.allclose(ema.shadow_params[k], ref_shadow[k], atol=1e-5), k
        assert ema.shadow_params[k].dtype == model_params[k].dtype, k  # dtype preserved

    # --- eval-mode forward uses the shadow (EMA) params ----------------------
    ema.eval()
    y_eval = ema(x)
    y_eval_ref = x.reshape(-1, H_in) @ ref_shadow["weight"].T + ref_shadow["bias"]
    assert jnp.allclose(y_eval, y_eval_ref.reshape(B, S, H_out), atol=1e-5)

    jax.block_until_ready(y_eval)
    print("KERNEL_OK")
</pallas_src>

<mosaic_0001>
module attributes {stable_mosaic.version = 11 : i64} {
  func.func @_linear_kernel(%arg0: i32, %arg1: i32, %arg2: i32, %arg3: memref<16x32xf32, #tpu.memory_space<vmem>>, %arg4: memref<32x32xf32, #tpu.memory_space<vmem>>, %arg5: memref<1x32xf32, #tpu.memory_space<vmem>>, %arg6: memref<16x32xf32, #tpu.memory_space<vmem>>, %arg7: memref<16x32xf32, #tpu.memory_space<vmem>>) attributes {dimension_semantics = [#tpu.dimension_semantics<parallel>, #tpu.dimension_semantics<parallel>, #tpu.dimension_semantics<arbitrary>], iteration_bounds = array<i64: 1, 1, 1>, scalar_prefetch = 0 : i64, scratch_operands = 1 : i64, tpu.core_type = #tpu.core_type<tc>, window_params = [{transform_indices = @transform_0, window_bounds = array<i64: 16, 32>}, {transform_indices = @transform_1, window_bounds = array<i64: 32, 32>}, {transform_indices = @transform_2, window_bounds = array<i64: 1, 32>}, {transform_indices = @transform_3, window_bounds = array<i64: 16, 32>}]} {
    %c0_i32 = arith.constant 0 : i32
    %0 = arith.cmpi eq, %arg2, %c0_i32 : i32
    %1 = arith.extui %0 : i1 to i32
    %c0_i32_0 = arith.constant 0 : i32
    %2 = arith.cmpi ne, %1, %c0_i32_0 : i32
    scf.if %2 {
      %cst_10 = arith.constant 0.000000e+00 : f32
      %12 = vector.broadcast %cst_10 : f32 to vector<16x32xf32>
      %c0_11 = arith.constant 0 : index
      %c0_12 = arith.constant 0 : index
      %13 = vector.load %arg7[%c0_11, %c0_12] : memref<16x32xf32, #tpu.memory_space<vmem>>, vector<16x32xf32>
      tpu.vector_store %arg7[%c0_11, %c0_12], %12 {strides = array<i32>} : memref<16x32xf32, #tpu.memory_space<vmem>>, vector<16x32xf32>,
    } else {
    }
    %c0 = arith.constant 0 : index
    %c0_1 = arith.constant 0 : index
    %3 = vector.load %arg7[%c0, %c0_1] : memref<16x32xf32, #tpu.memory_space<vmem>>, vector<16x32xf32>
    %c0_2 = arith.constant 0 : index
    %c0_3 = arith.constant 0 : index
    %4 = vector.load %arg3[%c0_2, %c0_3] : memref<16x32xf32, #tpu.memory_space<vmem>>, vector<16x32xf32>
    %c0_4 = arith.constant 0 : index
    %c0_5 = arith.constant 0 : index
    %5 = vector.load %arg4[%c0_4, %c0_5] : memref<32x32xf32, #tpu.memory_space<vmem>>, vector<32x32xf32>
    %cst = arith.constant dense<0.000000e+00> : vector<16x32xf32>
    %6 = tpu.matmul %4, %5, %cst {dimension_numbers = #tpu.dot_dimension_numbers<[1], [1], [0], [0], [0, 0, 1, 0], [], []>} : vector<16x32xf32>, vector<32x32xf32>, vector<16x32xf32> -> vector<16x32xf32>
    %7 = arith.addf %3, %6 : vector<16x32xf32>
    %c0_6 = arith.constant 0 : index
    %c0_7 = arith.constant 0 : index
    %8 = vector.load %arg7[%c0_6, %c0_7] : memref<16x32xf32, #tpu.memory_space<vmem>>, vector<16x32xf32>
    tpu.vector_store %arg7[%c0_6, %c0_7], %7 {strides = array<i32>} : memref<16x32xf32, #tpu.memory_space<vmem>>, vector<16x32xf32>,
    %c0_i32_8 = arith.constant 0 : i32
    %9 = arith.cmpi eq, %arg2, %c0_i32_8 : i32
    %10 = arith.extui %9 : i1 to i32
    %c0_i32_9 = arith.constant 0 : i32
    %11 = arith.cmpi ne, %10, %c0_i32_9 : i32
    scf.if %11 {
      %c0_10 = arith.constant 0 : index
      %c0_11 = arith.constant 0 : index
      %12 = vector.load %arg7[%c0_10, %c0_11] : memref<16x32xf32, #tpu.memory_space<vmem>>, vector<16x32xf32>
      %c0_12 = arith.constant 0 : index
      %c0_13 = arith.constant 0 : index
      %13 = vector.load %arg5[%c0_12, %c0_13] : memref<1x32xf32, #tpu.memory_space<vmem>>, vector<1x32xf32>
      %14 = vector.broadcast %13 : vector<1x32xf32> to vector<16x32xf32>
      %15 = arith.addf %12, %14 : vector<16x32xf32>
      %c0_14 = arith.constant 0 : index
      %c0_15 = arith.constant 0 : index
      %16 = vector.load %arg6[%c0_14, %c0_15] : memref<16x32xf32, #tpu.memory_space<vmem>>, vector<16x32xf32>
      tpu.vector_store %arg6[%c0_14, %c0_15], %15 {strides = array<i32>} : memref<16x32xf32, #tpu.memory_space<vmem>>, vector<16x32xf32>,
    } else {
    }
    return
  }
  func.func @transform_0(%arg0: i32, %arg1: i32, %arg2: i32) -> (i32, i32) {
    %c0_i32 = arith.constant 0 : i32
    return %arg0, %arg2 : i32, i32
  }
  func.func @transform_1(%arg0: i32, %arg1: i32, %arg2: i32) -> (i32, i32) {
    %c0_i32 = arith.constant 0 : i32
    return %arg1, %arg2 : i32, i32
  }
  func.func @transform_2(%arg0: i32, %arg1: i32, %arg2: i32) -> (i32, i32) {
    %c0_i32 = arith.constant 0 : i32
    %c0_i32_0 = arith.constant 0 : i32
    return %c0_i32, %arg1 : i32, i32
  }
  func.func @transform_3(%arg0: i32, %arg1: i32, %arg2: i32) -> (i32, i32) {
    %c0_i32 = arith.constant 0 : i32
    return %arg0, %arg1 : i32, i32
  }
}

</mosaic_0001>

<llo_original>
// kernel: tpu_custom_call.1
$region0: #{tpu_custom_call.1}
  #allocation0 [shape = 'u32[]', space=smem, size = 0x4, offset = 0x4, fixed_abs, tag = 'smem constant byte address 0x4 - core index']
  #allocation1 [shape = 'u32[144,128]{1,0:T(1,128)}', space=vmem, size = 0x12000, scoped, tag = 'internal scratch']
  #allocation2 [shape = 'f32[16,32]{1,0:T(8,128)}', space=vmem, size = 0x2000, scoped, tag = 'scratch operand']
  %s0 = inlined_call_operand.hbm [shape: f32[16,32], index: 0, kind: input, shape index: {}]
  %s1 = inlined_call_operand.hbm [shape: f32[32,32], index: 1, kind: input, shape index: {}]
  %s2 = inlined_call_operand.vmem [shape: f32[1,32], index: 2, kind: input, shape index: {}]
  %s3 = inlined_call_operand.hbm [shape: f32[16,32], index: 3, kind: output, shape index: {}]
  %s4 = sld [smem:[#allocation0]]
  $region38: #{tpu_custom_call.1} parent=0
    _
  %s6 = ssub.s32 1, %s4
  %s7 = scalar_select 0, %s6, %s4
  $region1: #{tpu_custom_call.1} parent=0
    #allocation3 [shape = 'u8[8192]{0}', space=vmem, size = 0x2000, scoped, tag = 'input window, operand 0, single buffered']
    #allocation4 [shape = 's32[1]{0}', space=sflag, size = 0x4, scoped, tag = 'scoped memory for tpu_custom_call.1']
    #allocation5 [shape = 's32[1]{0}', space=sflag, size = 0x4, scoped, tag = 'scoped memory for tpu_custom_call.1']
    #allocation6 [shape = 'u8[16384]{0}', space=vmem, size = 0x4000, scoped, tag = 'input window, operand 1, single buffered']
    #allocation7 [shape = 's32[1]{0}', space=sflag, size = 0x4, scoped, tag = 'scoped memory for tpu_custom_call.1']
    #allocation8 [shape = 'u8[8192]{0}', space=vmem, size = 0x2000, scoped, tag = 'output window, operand 0, single buffered']
    %8 = vsyncpa [#allocation4], 0
    %9 = vsyncpa [#allocation7], 0
    %10 = vsyncpa [#allocation5], 0
    // Predicated region
    $region2: #{tpu_custom_call.1} parent=1 // pred_check
      _
    $region3: #{tpu_custom_call.1} parent=1 // pred_check_branch
      %12 = sbr.rel (0) target = $region5
    $region4: #{tpu_custom_call.1} parent=1 // pred_region
      %s14 = ssub.s32 256, 256
      %15 = vsyncadd [#allocation4], %s14
      %s16 = sshll.u32 [#allocation3], 4
      %s17 = int_to_ptr.vmem [resolvable:$true] %s16
      %22 = dma.hbm_to_vmem [thread:$0]  %s0, 256, %s17, [#allocation4], 128, 128, 8
    $region5: #{tpu_custom_call.1} parent=1 // pred_fallthru
      _
    // Predicated region
    $region6: #{tpu_custom_call.1} parent=1 // pred_check
      _
    $region7: #{tpu_custom_call.1} parent=1 // pred_check_branch
      %24 = sbr.rel (0) target = $region9
    $region8: #{tpu_custom_call.1} parent=1 // pred_region
      %s26 = ssub.s32 512, 512
      %27 = vsyncadd [#allocation7], %s26
      %s28 = sshll.u32 [#allocation6], 4
      %s29 = int_to_ptr.vmem [resolvable:$true] %s28
      %34 = dma.hbm_to_vmem [thread:$0]  %s1, 512, %s29, [#allocation7], 128, 128, 8
    $region9: #{tpu_custom_call.1} parent=1 // pred_fallthru
      _
    // Predicated region
    $region10: #{tpu_custom_call.1} parent=1 // pred_check
      _
    $region11: #{tpu_custom_call.1} parent=1 // pred_check_branch
      %36 = sbr.rel (0) target = $region13
    $region12: #{tpu_custom_call.1} parent=1 // pred_region
      _
    $region13: #{tpu_custom_call.1} parent=1 // pred_fallthru
      _
    // Predicated region
    $region14: #{tpu_custom_call.1} parent=1 // pred_check
      _
    $region15: #{tpu_custom_call.1} parent=1 // pred_check_branch
      %38 = sbr.rel (0) target = $region17
    $region16: #{tpu_custom_call.1} parent=1 // pred_region
      %39 = dma.done [#allocation4], 256
    $region17: #{tpu_custom_call.1} parent=1 // pred_fallthru
      _
    // Predicated region
    $region18: #{tpu_custom_call.1} parent=1 // pred_check
      _
    $region19: #{tpu_custom_call.1} parent=1 // pred_check_branch
      %41 = sbr.rel (0) target = $region21
    $region20: #{tpu_custom_call.1} parent=1 // pred_region
      %42 = dma.done [#allocation7], 512
    $region21: #{tpu_custom_call.1} parent=1 // pred_fallthru
      _
    %p43 = scmp.eq.s32.totalorder 0, 0
    // Predicated region
    $region22: #{tpu_custom_call.1} parent=1 // pred_check
      %p44 = pneg %p43
    $region23: #{tpu_custom_call.1} parent=1 // pred_check_branch
      %46 = sbr.rel (%p44) target = $region25
    $region24: #{tpu_custom_call.1} parent=1 // pred_region
      %vm47 = vcmask 261120
      %48 = vst.msk [vmem:[#allocation2] sm:$0xff] %vm47, 0.0
      %49 = vst.msk [vmem:[#allocation2 + $0x8] sm:$0xff] %vm47, 0.0
    $region25: #{tpu_custom_call.1} parent=1 // pred_fallthru
      _
    %v50 = vld [vmem:[#allocation2] sm:$0xff]
    %v51 = vld [vmem:[#allocation2 + $0x8] sm:$0xff]
    %v52 = vld [vmem:[#allocation3] sm:$0xff]
    %v53 = vld [vmem:[#allocation3 + $0x8] sm:$0xff]
    %v54 = vld [vmem:[#allocation6] sm:$0xff]
    %v55 = vld [vmem:[#allocation6 + $0x8] sm:$0xff]
    %v56 = vld [vmem:[#allocation6 + $0x10] sm:$0xff]
    %v57 = vld [vmem:[#allocation6 + $0x18] sm:$0xff]
    %vm58 = vcmask 261120
    %v60 = vsel %vm58, %v52, 0
    %v63 = vsel %vm58, %v53, 0
    %v66 = vsel %vm58, %v54, 0
    %v69 = vsel %vm58, %v55, 0
    %v72 = vsel %vm58, %v56, 0
    %v75 = vsel %vm58, %v57, 0
    %77 = vmatprep.subr.mxu0 0.0
    %78 = vmatpush1.xpose.msra.mxu0 %v66
    %79 = vmatprep.subr.mxu0 0.0
    %80 = vmatpush1.xpose.msra.mxu0 %v69
    %81 = vmatprep.subr.mxu0 0.0
    %82 = vmatpush1.xpose.msra.mxu0 %v72
    %83 = vmatprep.subr.mxu0 0.0
    %84 = vmatpush1.xpose.msra.mxu0 %v75
    %85 = vmatprep.subr.mxu0 0.0
    %86 = vmatpush1.xpose.msra.mxu0 0.0
    %87 = vmatprep.subr.mxu0 0.0
    %88 = vmatpush1.xpose.msra.mxu0 0.0
    %89 = vmatprep.subr.mxu0 0.0
    %90 = vmatpush1.xpose.msra.mxu0 0.0
    %91 = vmatprep.subr.mxu0 0.0
    %92 = vmatpush1.xpose.msra.mxu0 0.0
    %93 = vmatprep.subr.mxu0 0.0
    %94 = vmatpush1.xpose.msra.mxu0 0.0
    %95 = vmatprep.subr.mxu0 0.0
    %96 = vmatpush1.xpose.msra.mxu0 0.0
    %97 = vmatprep.subr.mxu0 0.0
    %98 = vmatpush1.xpose.msra.mxu0 0.0
    %99 = vmatprep.subr.mxu0 0.0
    %100 = vmatpush1.xpose.msra.mxu0 0.0
    %101 = vmatprep.subr.mxu0 0.0
    %102 = vmatpush1.xpose.msra.mxu0 0.0
    %103 = vmatprep.subr.mxu0 0.0
    %104 = vmatpush1.xpose.msra.mxu0 0.0
    %105 = vmatprep.subr.mxu0 0.0
    %106 = vmatpush1.xpose.msra.mxu0 0.0
    %107 = vmatprep.subr.mxu0 0.0
    %108 = vmatpush1.xpose.msra.mxu0 0.0
    %109 = vmatprep.subr.mxu0 0.0
    %110 = vmatpush1.xpose.msra.mxu0 0.0
    %111 = vmatprep.subr.mxu0 0.0
    %112 = vmatpush1.xpose.msra.mxu0 0.0
    %113 = vmatprep.subr.mxu0 0.0
    %114 = vmatpush1.xpose.msra.mxu0 0.0
    %115 = vmatprep.subr.mxu0 0.0
    %116 = vmatpush1.xpose.msra.mxu0 0.0
    %117 = vmatprep.subr.mxu0 0.0
    %118 = vmatpush1.xpose.msra.mxu0 0.0
    %119 = vmatprep.subr.mxu0 0.0
    %120 = vmatpush1.xpose.msra.mxu0 0.0
    %121 = vmatprep.subr.mxu0 0.0
    %122 = vmatpush1.xpose.msra.mxu0 0.0
    %123 = vmatprep.subr.mxu0 0.0
    %124 = vmatpush1.xpose.msra.mxu0 0.0
    %125 = vmatprep.subr.mxu0 0.0
    %126 = vmatpush1.xpose.msra.mxu0 0.0
    %127 = vmatprep.subr.mxu0 0.0
    %128 = vmatpush1.xpose.msra.mxu0 0.0
    %129 = vmatprep.subr.mxu0 0.0
    %130 = vmatpush1.xpose.msra.mxu0 0.0
    %131 = vmatprep.subr.mxu0 0.0
    %132 = vmatpush1.xpose.msra.mxu0 0.0
    %133 = vmatprep.subr.mxu0 0.0
    %134 = vmatpush1.xpose.msra.mxu0 0.0
    %135 = vmatprep.subr.mxu0 0.0
    %136 = vmatpush1.xpose.msra.mxu0 0.0
    %137 = vmatprep.subr.mxu0 0.0
    %138 = vmatpush1.xpose.msra.mxu0 0.0
    %139 = vmatprep.subr.mxu0 0.0
    %140 = vmatpush1.xpose.msra.mxu0 0.0
    %141 = vmatprep.mubr.f32.mxu0 0.0
    %142 = vmatmul.mubr.f32.gmra.mrb[0].mxu0 %v60
    %v143 = vpop.f32.mrb[0].mxu0
    %v144 = vadd.f32 0.0, %v143
    %v145 = vpop.f32.mrb[0].mxu0
    %146 = vmatprep.mubr.f32.mxu0 0.0
    %147 = vmatmul.mubr.f32.gmra.mrb[0].mxu0 %v63
    %v148 = vpop.f32.mrb[0].mxu0
    %v149 = vadd.f32 0.0, %v148
    %v150 = vpop.f32.mrb[0].mxu0
    %151 = vdwg.mxu0
    %v152 = vadd.f32 %v50, %v144
    %v153 = vadd.f32 %v51, %v149
    %154 = vst.msk [vmem:[#allocation2] sm:$0xff] %vm58, %v152
    %155 = vst.msk [vmem:[#allocation2 + $0x8] sm:$0xff] %vm58, %v153
    // Predicated region
    $region26: #{tpu_custom_call.1} parent=1 // pred_check
      %p156 = pneg %p43
    $region27: #{tpu_custom_call.1} parent=1 // pred_check_branch
      %158 = sbr.rel (%p156) target = $region29
    $region28: #{tpu_custom_call.1} parent=1 // pred_region
      %v159 = vld [vmem:[#allocation2] sm:$0xff]
      %v160 = vld [vmem:[#allocation2 + $0x8] sm:$0xff]
      %v161 = vld [vmem:[%s2] sm:$0x1]
      %v163 = vlaneseq
      %v164 = vshrl.u32 %v163, 7
      %v165 = vsub.s32 0, %v164
      %v166 = vrot.slane %v161, %v165
      %v168 = vadd.f32 %v159, %v166
      %v169 = vadd.f32 %v160, %v166
      %170 = vst.msk [vmem:[#allocation8] sm:$0xff] %vm58, %v168
      %171 = vst.msk [vmem:[#allocation8 + $0x8] sm:$0xff] %vm58, %v169
    $region29: #{tpu_custom_call.1} parent=1 // pred_fallthru
      _
    // Predicated region
    $region30: #{tpu_custom_call.1} parent=1 // pred_check
      _
    $region31: #{tpu_custom_call.1} parent=1 // pred_check_branch
      %173 = sbr.rel (0) target = $region33
    $region32: #{tpu_custom_call.1} parent=1 // pred_region
      %s175 = ssub.s32 256, 256
      %176 = vsyncadd [#allocation5], %s175
      %s177 = sshll.u32 [#allocation8], 4
      %s178 = int_to_ptr.vmem [resolvable:$true] %s177
      %183 = dma.vmem_to_hbm [thread:$0]  %s178, 256, %s3, [#allocation5], 128, 128, 8
    $region33: #{tpu_custom_call.1} parent=1 // pred_fallthru
      _
    // Predicated region
    $region34: #{tpu_custom_call.1} parent=1 // pred_check
      _
    $region35: #{tpu_custom_call.1} parent=1 // pred_check_branch
      %185 = sbr.rel (0) target = $region37
    $region36: #{tpu_custom_call.1} parent=1 // pred_region
      %186 = dma.done [#allocation5], 256
    $region37: #{tpu_custom_call.1} parent=1 // pred_fallthru
      _
    %187 = vsyncpa [#allocation4], 1
    %188 = vsyncpa [#allocation7], 1
    %189 = vsyncpa [#allocation5], 1

</llo_original>
